<compile_context>
chip_gen: v6e
topology: v6e:2x2x1
jax: 0.10.0
libtpu: 0.0.40
codegen_flags: <defaults>
</compile_context>

<pallas_src>
import functools

import jax
import jax.numpy as jnp
from jax.experimental import pallas as pl
from jax.experimental.pallas import tpu as pltpu


def _round_up(a, b):
    return (a + b - 1) // b * b


def _maxout_kernel(x_ref, w_ref, b_ref, o_ref, *, d_out, pool_size, group_width):
    # x_ref: (tm, d_in); w_ref: (d_in, pool*group_width); b_ref: (1, pool*group_width) f32
    # o_ref: (tm, d_out)
    # Single wide matmul over all pool groups; native-dtype operands, f32 accumulation.
    y = jnp.dot(x_ref[...], w_ref[...], preferred_element_type=jnp.float32)
    y = y + b_ref[...]                              # bias already f32 (cast hoisted to pack time)
    # Max over pool groups: columns [p*group_width, (p+1)*group_width) hold group p.
    # group_width is a multiple of 128 -> every slice starts on a vreg lane boundary.
    m = y[:, 0:group_width]
    for p in range(1, pool_size):                   # pool is small & static -> unrolled
        m = jnp.maximum(m, y[:, p * group_width:(p + 1) * group_width])
    # Only the first d_out columns are real; padded columns are discarded here.
    o_ref[...] = m[:, 0:d_out].astype(o_ref.dtype)


def pack_maxout_params(weight, bias, d_out, pool_size, *, dtype=None, lane_align=128):
    """Repack PyTorch Linear params ONCE (hoisted out of the per-call path).

    weight: (d_out*pool, d_in), row index o*pool + p (matches torch
            view(..., d_out, pool).max(-1) grouping); bias: (d_out*pool,).

    Each pool group's d_out columns are zero-padded up to a multiple of
    `lane_align` (128) so in-kernel group slices are vreg-lane aligned.

    Returns:
      w_packed: (d_in, pool*group_width), column index p*group_width + o
      b_packed: (1, pool*group_width), f32, same column order
      group_width: padded per-group width (== d_out when d_out % 128 == 0)
    """
    d_in = weight.shape[-1]
    group_width = _round_up(d_out, lane_align)
    w = jnp.asarray(weight, dtype=jnp.float32)
    b = jnp.asarray(bias, dtype=jnp.float32)
    w = w.reshape(d_out, pool_size, d_in).transpose(2, 1, 0)     # (d_in, pool, d_out)
    b = b.reshape(d_out, pool_size).T                            # (pool, d_out)
    if group_width != d_out:
        w = jnp.pad(w, ((0, 0), (0, 0), (0, group_width - d_out)))
        b = jnp.pad(b, ((0, 0), (0, group_width - d_out)))
    w_packed = w.reshape(d_in, pool_size * group_width)
    b_packed = b.reshape(1, pool_size * group_width)             # kept f32
    if dtype is not None:
        w_packed = w_packed.astype(dtype)
    return w_packed, b_packed, group_width


def maxout_pallas(x, w_packed, b_packed, d_out, pool_size, *,
                  tile_vmem_budget=4 * 1024 * 1024):
    """x: (..., d_in); w_packed/b_packed/group_width from pack_maxout_params."""
    d_in = x.shape[-1]
    lead = x.shape[:-1]
    out_dtype = x.dtype
    x2d = x.reshape(-1, d_in)
    M = x2d.shape[0]

    n_wide = w_packed.shape[-1]
    group_width = n_wide // pool_size

    x_itemsize = x2d.dtype.itemsize
    out_itemsize = jnp.dtype(out_dtype).itemsize
    # Sublane packing of the row axis: 8 for 4-byte, 16 for 2-byte, 32 for 1-byte dtypes.
    pack = max(8, 32 // max(x_itemsize, 1))

    M_sub = _round_up(M, pack)

    # Per-row VMEM bytes of one grid step's working set: double-buffered x and
    # out tiles plus the f32 wide matmul result and running max.
    per_row = (2 * d_in * x_itemsize        # x tile (double buffered)
               + 4 * n_wide                 # wide f32 matmul result
               + 4 * group_width            # running max (f32)
               + 2 * d_out * out_itemsize)  # out tile (double buffered)
    tm_budget = max(pack, min(2048, tile_vmem_budget // per_row) // pack * pack)

    # Grid steps: enough to respect the VMEM budget; at least 2 when the
    # problem is big enough so both TensorCores of a v7x chip get work.
    steps = max(1, -(-M_sub // tm_budget))          # cdiv
    if M_sub >= 2 * 1024:
        steps = max(steps, 2)
    tm_eff = _round_up(-(-M_sub // steps), pack)    # keeps padding < steps * pack rows
    M_pad = steps * tm_eff
    if M_pad != M:
        x2d = jnp.pad(x2d, ((0, M_pad - M), (0, 0)))

    # Generation-aware VMEM limit: size from the actual working set, capped
    # well below the physical capacity (v7x: 64 MiB/TC, v5e/v6e: 128 MiB).
    w_bytes = w_packed.size * w_packed.dtype.itemsize
    b_bytes = b_packed.size * b_packed.dtype.itemsize
    need = w_bytes + b_bytes + tm_eff * per_row
    try:
        vmem_cap = pltpu.get_tpu_info().vmem_capacity_bytes
    except Exception:  # fall back to the smallest (v7x per-TC) capacity
        vmem_cap = 64 * 1024 * 1024
    vmem_limit = int(min(max(2 * need, 32 * 1024 * 1024), 0.7 * vmem_cap))

    flops = 2 * M_pad * d_in * n_wide
    bytes_accessed = (x2d.size * x_itemsize + w_bytes + b_bytes
                      + M_pad * d_out * out_itemsize)

    kernel = functools.partial(_maxout_kernel, d_out=d_out, pool_size=pool_size,
                               group_width=group_width)

    def build(resident_mode):
        grid_spec = pltpu.PrefetchScalarGridSpec(
            num_scalar_prefetch=0,
            grid=(steps,),
            in_specs=[
                pl.BlockSpec((tm_eff, d_in), lambda i: (i, 0)),
                # Weight/bias never change across the grid (constant index_map):
                # single-buffer the resident slabs.
                pl.BlockSpec((d_in, n_wide), lambda i: (0, 0),
                             pipeline_mode=resident_mode),
                pl.BlockSpec((1, n_wide), lambda i: (0, 0),
                             pipeline_mode=resident_mode),
            ],
            out_specs=pl.BlockSpec((tm_eff, d_out), lambda i: (i, 0)),
        )
        return pl.pallas_call(
            kernel,
            out_shape=jax.ShapeDtypeStruct((M_pad, d_out), out_dtype),
            grid_spec=grid_spec,
            compiler_params=pltpu.CompilerParams(
                dimension_semantics=("parallel",),
                vmem_limit_bytes=vmem_limit),
            cost_estimate=pl.CostEstimate(
                flops=flops, transcendentals=0, bytes_accessed=bytes_accessed),
        )

    try:
        out2d = build(pl.Buffered(1))(x2d, w_packed, b_packed)
    except Exception:
        # Fallback if this runtime rejects buffer_count=1 for pipelined inputs.
        out2d = build(None)(x2d, w_packed, b_packed)

    if M_pad != M:
        out2d = out2d[:M]
    return out2d.reshape(*lead, d_out)


def maxout_reference(x, weight, bias, d_out, pool_size):
    # Plain-JAX reference mirroring the PyTorch forward exactly (f32, highest precision).
    out = jnp.einsum("...i,oi->...o", x.astype(jnp.float32), weight.astype(jnp.float32),
                     precision=jax.lax.Precision.HIGHEST) + bias.astype(jnp.float32)
    out = out.reshape(*x.shape[:-1], d_out, pool_size)
    return out.max(axis=-1)


if __name__ == "__main__":
    d_in, d_out, pool_size = 32, 16, 4

    key = jax.random.PRNGKey(0)
    kx, kw, kb, kx2, kx3 = jax.random.split(key, 5)

    # Deterministic parameter init (PyTorch Linear default: U(-1/sqrt(d_in), 1/sqrt(d_in))).
    bound = 1.0 / (d_in ** 0.5)
    weight = jax.random.uniform(kw, (d_out * pool_size, d_in),
                                minval=-bound, maxval=bound, dtype=jnp.float32)
    bias = jax.random.uniform(kb, (d_out * pool_size,),
                              minval=-bound, maxval=bound, dtype=jnp.float32)

    # Pack parameters once (hoisted out of the forward path).
    w_packed, b_packed, _ = pack_maxout_params(weight, bias, d_out, pool_size)

    # Tolerances are generous enough to cover any MXU f32 pass configuration;
    # a packing/layout bug would produce O(1) mismatches and still be caught.
    TOL = dict(atol=2e-2, rtol=2e-2)

    # Case 1: batch=2, seq=8 (M divisible by the effective tile).
    x = jax.random.normal(kx, (2, 8, d_in), dtype=jnp.float32)
    out = jax.block_until_ready(maxout_pallas(x, w_packed, b_packed, d_out, pool_size))
    ref = maxout_reference(x, weight, bias, d_out, pool_size)
    assert out.shape == (2, 8, d_out), out.shape
    assert jnp.allclose(out, ref, **TOL), "mismatch vs reference (case 1)"

    # Case 2: batch=3, seq=5 (M=15, exercises the wrapper row-padding path).
    x2 = jax.random.normal(kx2, (3, 5, d_in), dtype=jnp.float32)
    out2 = jax.block_until_ready(maxout_pallas(x2, w_packed, b_packed, d_out, pool_size))
    ref2 = maxout_reference(x2, weight, bias, d_out, pool_size)
    assert out2.shape == (3, 5, d_out), out2.shape
    assert jnp.allclose(out2, ref2, **TOL), "mismatch vs reference (case 2)"

    # Case 3: bf16-streamed variant (halves HBM bytes on the memory-bound x
    # stream; f32 accumulation / bias / max stay inside the kernel).
    wbf, bbf, _ = pack_maxout_params(weight, bias, d_out, pool_size, dtype=jnp.bfloat16)
    x3 = jax.random.normal(kx3, (2, 8, d_in), dtype=jnp.float32).astype(jnp.bfloat16)
    out3 = jax.block_until_ready(maxout_pallas(x3, wbf, bbf, d_out, pool_size))
    ref3 = maxout_reference(x3.astype(jnp.float32),
                            weight.astype(jnp.bfloat16).astype(jnp.float32),
                            bias, d_out, pool_size)
    assert out3.shape == (2, 8, d_out), out3.shape
    assert jnp.allclose(out3.astype(jnp.float32), ref3, atol=3e-2, rtol=3e-2), \
        "mismatch vs reference (case 3, bf16)"

    print("KERNEL_OK")
</pallas_src>

<mosaic_0001>
module attributes {stable_mosaic.version = 11 : i64} {
  func.func @_maxout_kernel(%arg0: i32, %arg1: memref<16x32xf32, #tpu.memory_space<vmem>>, %arg2: memref<32x512xf32, #tpu.memory_space<vmem>>, %arg3: memref<1x512xf32, #tpu.memory_space<vmem>>, %arg4: memref<16x16xf32, #tpu.memory_space<vmem>>) attributes {dimension_semantics = [#tpu.dimension_semantics<parallel>], iteration_bounds = array<i64: 1>, scalar_prefetch = 0 : i64, scratch_operands = 0 : i64, tpu.core_type = #tpu.core_type<tc>, window_params = [{transform_indices = @transform_0, window_bounds = array<i64: 16, 32>}, {pipeline_mode = #tpu.pipeline_mode<synchronous>, transform_indices = @transform_1, window_bounds = array<i64: 32, 512>}, {pipeline_mode = #tpu.pipeline_mode<synchronous>, transform_indices = @transform_2, window_bounds = array<i64: 1, 512>}, {transform_indices = @transform_3, window_bounds = array<i64: 16, 16>}]} {
    %c0 = arith.constant 0 : index
    %c0_0 = arith.constant 0 : index
    %0 = vector.load %arg1[%c0, %c0_0] : memref<16x32xf32, #tpu.memory_space<vmem>>, vector<16x32xf32>
    %c0_1 = arith.constant 0 : index
    %c0_2 = arith.constant 0 : index
    %1 = vector.load %arg2[%c0_1, %c0_2] : memref<32x512xf32, #tpu.memory_space<vmem>>, vector<32x512xf32>
    %cst = arith.constant dense<0.000000e+00> : vector<16x512xf32>
    %2 = tpu.matmul %0, %1, %cst {dimension_numbers = #tpu.dot_dimension_numbers<[1], [0], [0], [1], [0, 0, 1, 1], [], []>} : vector<16x32xf32>, vector<32x512xf32>, vector<16x512xf32> -> vector<16x512xf32>
    %c0_3 = arith.constant 0 : index
    %c0_4 = arith.constant 0 : index
    %3 = vector.load %arg3[%c0_3, %c0_4] : memref<1x512xf32, #tpu.memory_space<vmem>>, vector<1x512xf32>
    %4 = vector.broadcast %3 : vector<1x512xf32> to vector<16x512xf32>
    %5 = arith.addf %2, %4 : vector<16x512xf32>
    %6 = vector.extract_strided_slice %5 {offsets = [0, 0], sizes = [16, 128], strides = [1, 1]} : vector<16x512xf32> to vector<16x128xf32>
    %7 = vector.extract_strided_slice %5 {offsets = [0, 128], sizes = [16, 128], strides = [1, 1]} : vector<16x512xf32> to vector<16x128xf32>
    %8 = arith.maximumf %6, %7 : vector<16x128xf32>
    %9 = vector.extract_strided_slice %5 {offsets = [0, 256], sizes = [16, 128], strides = [1, 1]} : vector<16x512xf32> to vector<16x128xf32>
    %10 = arith.maximumf %8, %9 : vector<16x128xf32>
    %11 = vector.extract_strided_slice %5 {offsets = [0, 384], sizes = [16, 128], strides = [1, 1]} : vector<16x512xf32> to vector<16x128xf32>
    %12 = arith.maximumf %10, %11 : vector<16x128xf32>
    %13 = vector.extract_strided_slice %12 {offsets = [0, 0], sizes = [16, 16], strides = [1, 1]} : vector<16x128xf32> to vector<16x16xf32>
    %c0_5 = arith.constant 0 : index
    %c0_6 = arith.constant 0 : index
    %14 = vector.load %arg4[%c0_5, %c0_6] : memref<16x16xf32, #tpu.memory_space<vmem>>, vector<16x16xf32>
    tpu.vector_store %arg4[%c0_5, %c0_6], %13 {strides = array<i32>} : memref<16x16xf32, #tpu.memory_space<vmem>>, vector<16x16xf32>,
    return
  }
  func.func @transform_0(%arg0: i32) -> (i32, i32) {
    %c0_i32 = arith.constant 0 : i32
    %c0_i32_0 = arith.constant 0 : i32
    return %arg0, %c0_i32 : i32, i32
  }
  func.func @transform_1(%arg0: i32) -> (i32, i32) {
    %c0_i32 = arith.constant 0 : i32
    %c0_i32_0 = arith.constant 0 : i32
    %c0_i32_1 = arith.constant 0 : i32
    return %c0_i32, %c0_i32_0 : i32, i32
  }
  func.func @transform_2(%arg0: i32) -> (i32, i32) {
    %c0_i32 = arith.constant 0 : i32
    %c0_i32_0 = arith.constant 0 : i32
    %c0_i32_1 = arith.constant 0 : i32
    return %c0_i32, %c0_i32_0 : i32, i32
  }
  func.func @transform_3(%arg0: i32) -> (i32, i32) {
    %c0_i32 = arith.constant 0 : i32
    %c0_i32_0 = arith.constant 0 : i32
    return %arg0, %c0_i32 : i32, i32
  }
}

module attributes {stable_mosaic.version = 11 : i64} {
  func.func @_maxout_kernel(%arg0: i32, %arg1: memref<16x32xf32, #tpu.memory_space<vmem>>, %arg2: memref<32x512xf32, #tpu.memory_space<vmem>>, %arg3: memref<1x512xf32, #tpu.memory_space<vmem>>, %arg4: memref<16x16xf32, #tpu.memory_space<vmem>>) attributes {dimension_semantics = [#tpu.dimension_semantics<parallel>], iteration_bounds = array<i64: 1>, scalar_prefetch = 0 : i64, scratch_operands = 0 : i64, tpu.core_type = #tpu.core_type<tc>, window_params = [{transform_indices = @transform_0, window_bounds = array<i64: 16, 32>}, {pipeline_mode = #tpu.pipeline_mode<synchronous>, transform_indices = @transform_1, window_bounds = array<i64: 32, 512>}, {pipeline_mode = #tpu.pipeline_mode<synchronous>, transform_indices = @transform_2, window_bounds = array<i64: 1, 512>}, {transform_indices = @transform_3, window_bounds = array<i64: 16, 16>}]} {
    %c0 = arith.constant 0 : index
    %c0_0 = arith.constant 0 : index
    %0 = vector.load %arg1[%c0, %c0_0] : memref<16x32xf32, #tpu.memory_space<vmem>>, vector<16x32xf32>
    %c0_1 = arith.constant 0 : index
    %c0_2 = arith.constant 0 : index
    %1 = vector.load %arg2[%c0_1, %c0_2] : memref<32x512xf32, #tpu.memory_space<vmem>>, vector<32x512xf32>
    %cst = arith.constant dense<0.000000e+00> : vector<16x512xf32>
    %2 = tpu.matmul %0, %1, %cst {dimension_numbers = #tpu.dot_dimension_numbers<[1], [0], [0], [1], [0, 0, 1, 1], [], []>} : vector<16x32xf32>, vector<32x512xf32>, vector<16x512xf32> -> vector<16x512xf32>
    %c0_3 = arith.constant 0 : index
    %c0_4 = arith.constant 0 : index
    %3 = vector.load %arg3[%c0_3, %c0_4] : memref<1x512xf32, #tpu.memory_space<vmem>>, vector<1x512xf32>
    %4 = vector.broadcast %3 : vector<1x512xf32> to vector<16x512xf32>
    %5 = arith.addf %2, %4 : vector<16x512xf32>
    %6 = vector.extract_strided_slice %5 {offsets = [0, 0], sizes = [16, 128], strides = [1, 1]} : vector<16x512xf32> to vector<16x128xf32>
    %7 = vector.extract_strided_slice %5 {offsets = [0, 128], sizes = [16, 128], strides = [1, 1]} : vector<16x512xf32> to vector<16x128xf32>
    %8 = arith.maximumf %6, %7 : vector<16x128xf32>
    %9 = vector.extract_strided_slice %5 {offsets = [0, 256], sizes = [16, 128], strides = [1, 1]} : vector<16x512xf32> to vector<16x128xf32>
    %10 = arith.maximumf %8, %9 : vector<16x128xf32>
    %11 = vector.extract_strided_slice %5 {offsets = [0, 384], sizes = [16, 128], strides = [1, 1]} : vector<16x512xf32> to vector<16x128xf32>
    %12 = arith.maximumf %10, %11 : vector<16x128xf32>
    %13 = vector.extract_strided_slice %12 {offsets = [0, 0], sizes = [16, 16], strides = [1, 1]} : vector<16x128xf32> to vector<16x16xf32>
    %c0_5 = arith.constant 0 : index
    %c0_6 = arith.constant 0 : index
    %14 = vector.load %arg4[%c0_5, %c0_6] : memref<16x16xf32, #tpu.memory_space<vmem>>, vector<16x16xf32>
    tpu.vector_store %arg4[%c0_5, %c0_6], %13 {strides = array<i32>} : memref<16x16xf32, #tpu.memory_space<vmem>>, vector<16x16xf32>,
    return
  }
  func.func @transform_0(%arg0: i32) -> (i32, i32) {
    %c0_i32 = arith.constant 0 : i32
    %c0_i32_0 = arith.constant 0 : i32
    return %arg0, %c0_i32 : i32, i32
  }
  func.func @transform_1(%arg0: i32) -> (i32, i32) {
    %c0_i32 = arith.constant 0 : i32
    %c0_i32_0 = arith.constant 0 : i32
    %c0_i32_1 = arith.constant 0 : i32
    return %c0_i32, %c0_i32_0 : i32, i32
  }
  func.func @transform_2(%arg0: i32) -> (i32, i32) {
    %c0_i32 = arith.constant 0 : i32
    %c0_i32_0 = arith.constant 0 : i32
    %c0_i32_1 = arith.constant 0 : i32
    return %c0_i32, %c0_i32_0 : i32, i32
  }
  func.func @transform_3(%arg0: i32) -> (i32, i32) {
    %c0_i32 = arith.constant 0 : i32
    %c0_i32_0 = arith.constant 0 : i32
    return %arg0, %c0_i32 : i32, i32
  }
}

</mosaic_0001>

<llo_original>
// kernel: tpu_custom_call.1
$region0: #{tpu_custom_call.1}
  #allocation0 [shape = 'u32[]', space=smem, size = 0x4, offset = 0x4, fixed_abs, tag = 'smem constant byte address 0x4 - core index']
  #allocation1 [shape = 'u32[144,128]{1,0:T(1,128)}', space=vmem, size = 0x12000, scoped, tag = 'internal scratch']
  %s0 = inlined_call_operand.hbm [shape: f32[16,32], index: 0, kind: input, shape index: {}]
  %s1 = inlined_call_operand.hbm [shape: f32[32,512], index: 1, kind: input, shape index: {}]
  %s2 = inlined_call_operand.hbm [shape: f32[1,512], index: 2, kind: input, shape index: {}]
  %s3 = inlined_call_operand.hbm [shape: f32[16,16], index: 3, kind: output, shape index: {}]
  %s4 = sld [smem:[#allocation0]]
  $region34: #{tpu_custom_call.1} parent=0
    _
  %s6 = ssub.s32 1, %s4
  %s7 = scalar_select 0, %s6, %s4
  $region1: #{tpu_custom_call.1} parent=0
    #allocation2 [shape = 'u8[8192]{0}', space=vmem, size = 0x2000, scoped, tag = 'input window, operand 0, single buffered']
    #allocation3 [shape = 's32[1]{0}', space=sflag, size = 0x4, scoped, tag = 'scoped memory for tpu_custom_call.1']
    #allocation4 [shape = 's32[1]{0}', space=sflag, size = 0x4, scoped, tag = 'scoped memory for tpu_custom_call.1']
    #allocation5 [shape = 'u8[65536]{0}', space=vmem, size = 0x10000, scoped, tag = 'input window, operand 1, single buffered']
    #allocation6 [shape = 's32[1]{0}', space=sflag, size = 0x4, scoped, tag = 'scoped memory for tpu_custom_call.1']
    #allocation7 [shape = 'u8[2048]{0}', space=vmem, size = 0x800, scoped, tag = 'input window, operand 2, single buffered']
    #allocation8 [shape = 'u8[8192]{0}', space=vmem, size = 0x2000, scoped, tag = 'output window, operand 0, single buffered']
    %8 = vsyncpa [#allocation3], 0
    %9 = vsyncpa [#allocation6], 0
    %10 = vsyncpa [#allocation4], 0
    // Predicated region
    $region2: #{tpu_custom_call.1} parent=1 // pred_check
      _
    $region3: #{tpu_custom_call.1} parent=1 // pred_check_branch
      %12 = sbr.rel (0) target = $region5
    $region4: #{tpu_custom_call.1} parent=1 // pred_region
      %s14 = ssub.s32 256, 256
      %15 = vsyncadd [#allocation3], %s14
      %s16 = sshll.u32 [#allocation2], 4
      %s17 = int_to_ptr.vmem [resolvable:$true] %s16
      %22 = dma.hbm_to_vmem [thread:$0]  %s0, 256, %s17, [#allocation3], 128, 128, 8
    $region5: #{tpu_custom_call.1} parent=1 // pred_fallthru
      _
    // Predicated region
    $region6: #{tpu_custom_call.1} parent=1 // pred_check
      _
    $region7: #{tpu_custom_call.1} parent=1 // pred_check_branch
      %24 = sbr.rel (0) target = $region9
    $region8: #{tpu_custom_call.1} parent=1 // pred_region
      %s26 = ssub.s32 2048, 2048
      %27 = vsyncadd [#allocation6], %s26
      %s28 = sshll.u32 [#allocation5], 4
      %s29 = int_to_ptr.vmem [resolvable:$true] %s28
      %34 = dma.hbm_to_vmem [thread:$0]  %s1, 2048, %s29, [#allocation6], 512, 512, 32
    $region9: #{tpu_custom_call.1} parent=1 // pred_fallthru
      _
    // Predicated region
    $region10: #{tpu_custom_call.1} parent=1 // pred_check
      _
    $region11: #{tpu_custom_call.1} parent=1 // pred_check_branch
      %36 = sbr.rel (0) target = $region13
    $region12: #{tpu_custom_call.1} parent=1 // pred_region
      %s38 = ssub.s32 64, 64
      %39 = vsyncadd [#allocation6], %s38
      %s41 = sshll.u32 [#allocation7], 4
      %s42 = int_to_ptr.vmem [resolvable:$true] %s41
      %44 = dma.hbm_to_vmem [thread:$0]  %s2, 64, %s42, [#allocation6]
    $region13: #{tpu_custom_call.1} parent=1 // pred_fallthru
      _
    // Predicated region
    $region14: #{tpu_custom_call.1} parent=1 // pred_check
      _
    $region15: #{tpu_custom_call.1} parent=1 // pred_check_branch
      %46 = sbr.rel (0) target = $region17
    $region16: #{tpu_custom_call.1} parent=1 // pred_region
      %47 = dma.done [#allocation3], 256
    $region17: #{tpu_custom_call.1} parent=1 // pred_fallthru
      _
    // Predicated region
    $region18: #{tpu_custom_call.1} parent=1 // pred_check
      _
    $region19: #{tpu_custom_call.1} parent=1 // pred_check_branch
      %49 = sbr.rel (0) target = $region21
    $region20: #{tpu_custom_call.1} parent=1 // pred_region
      %50 = dma.done [#allocation6], 2048
    $region21: #{tpu_custom_call.1} parent=1 // pred_fallthru
      _
    // Predicated region
    $region22: #{tpu_custom_call.1} parent=1 // pred_check
      _
    $region23: #{tpu_custom_call.1} parent=1 // pred_check_branch
      %52 = sbr.rel (0) target = $region25
    $region24: #{tpu_custom_call.1} parent=1 // pred_region
      %53 = dma.done [#allocation6], 64
    $region25: #{tpu_custom_call.1} parent=1 // pred_fallthru
      _
    %v54 = vld [vmem:[#allocation2] sm:$0xff]
    %v55 = vld [vmem:[#allocation2 + $0x8] sm:$0xff]
    %v56 = vld [vmem:[#allocation5] sm:$0xff]
    %v57 = vld [vmem:[#allocation5 + $0x8] sm:$0xff]
    %v58 = vld [vmem:[#allocation5 + $0x10] sm:$0xff]
    %v59 = vld [vmem:[#allocation5 + $0x18] sm:$0xff]
    %v60 = vld [vmem:[#allocation5 + $0x20] sm:$0xff]
    %v61 = vld [vmem:[#allocation5 + $0x28] sm:$0xff]
    %v62 = vld [vmem:[#allocation5 + $0x30] sm:$0xff]
    %v63 = vld [vmem:[#allocation5 + $0x38] sm:$0xff]
    %v64 = vld [vmem:[#allocation5 + $0x40] sm:$0xff]
    %v65 = vld [vmem:[#allocation5 + $0x48] sm:$0xff]
    %v66 = vld [vmem:[#allocation5 + $0x50] sm:$0xff]
    %v67 = vld [vmem:[#allocation5 + $0x58] sm:$0xff]
    %v68 = vld [vmem:[#allocation5 + $0x60] sm:$0xff]
    %v69 = vld [vmem:[#allocation5 + $0x68] sm:$0xff]
    %v70 = vld [vmem:[#allocation5 + $0x70] sm:$0xff]
    %v71 = vld [vmem:[#allocation5 + $0x78] sm:$0xff]
    %v72 = vld [vmem:[#allocation7] sm:$0xf]
    %v74 = vlaneseq
    %v75 = vshrl.u32 %v74, 7
    %v76 = vsub.s32 0, %v75
    %v77 = vrot.slane %v72, %v76
    %v78 = vlaneseq
    %v79 = vshrl.u32 %v78, 7
    %v80 = vsub.s32 1, %v79
    %v81 = vrot.slane %v72, %v80
    %v82 = vlaneseq
    %v83 = vshrl.u32 %v82, 7
    %v84 = vsub.s32 2, %v83
    %v85 = vrot.slane %v72, %v84
    %v86 = vlaneseq
    %v87 = vshrl.u32 %v86, 7
    %v88 = vsub.s32 3, %v87
    %v89 = vrot.slane %v72, %v88
    %vm94 = vcmask 261120
    %v96 = vsel %vm94, %v54, 0
    %v99 = vsel %vm94, %v55, 0
    %101 = vmatprep.subr.mxu0 0.0
    %102 = vmatpush1.msra.mxu0 0.0
    %103 = vmatprep.subr.mxu0 0.0
    %104 = vmatpush1.msra.mxu0 0.0
    %105 = vmatprep.subr.mxu0 0.0
    %106 = vmatpush1.msra.mxu0 0.0
    %107 = vmatprep.subr.mxu0 0.0
    %108 = vmatpush1.msra.mxu0 0.0
    %109 = vmatprep.subr.mxu0 0.0
    %110 = vmatpush1.msra.mxu0 0.0
    %111 = vmatprep.subr.mxu0 0.0
    %112 = vmatpush1.msra.mxu0 0.0
    %113 = vmatprep.subr.mxu0 0.0
    %114 = vmatpush1.msra.mxu0 0.0
    %115 = vmatprep.subr.mxu0 0.0
    %116 = vmatpush1.msra.mxu0 0.0
    %117 = vmatprep.subr.mxu0 0.0
    %118 = vmatpush1.msra.mxu0 0.0
    %119 = vmatprep.subr.mxu0 0.0
    %120 = vmatpush1.msra.mxu0 0.0
    %121 = vmatprep.subr.mxu0 0.0
    %122 = vmatpush1.msra.mxu0 0.0
    %123 = vmatprep.subr.mxu0 0.0
    %124 = vmatpush1.msra.mxu0 0.0
    %125 = vmatprep.subr.mxu0 %v69
    %126 = vmatpush1.msra.mxu0 %v68
    %127 = vmatprep.subr.mxu0 %v65
    %128 = vmatpush1.msra.mxu0 %v64
    %129 = vmatprep.subr.mxu0 %v61
    %130 = vmatpush1.msra.mxu0 %v60
    %131 = vmatprep.subr.mxu0 %v57
    %132 = vmatpush1.msra.mxu0 %v56
    %133 = vmatprep.subr.mxu0 0.0
    %134 = vmatpush2.msra.mxu0 0.0
    %135 = vmatprep.subr.mxu0 0.0
    %136 = vmatpush2.msra.mxu0 0.0
    %137 = vmatprep.subr.mxu0 0.0
    %138 = vmatpush2.msra.mxu0 0.0
    %139 = vmatprep.subr.mxu0 0.0
    %140 = vmatpush2.msra.mxu0 0.0
    %141 = vmatprep.subr.mxu0 0.0
    %142 = vmatpush2.msra.mxu0 0.0
    %143 = vmatprep.subr.mxu0 0.0
    %144 = vmatpush2.msra.mxu0 0.0
    %145 = vmatprep.subr.mxu0 0.0
    %146 = vmatpush2.msra.mxu0 0.0
    %147 = vmatprep.subr.mxu0 0.0
    %148 = vmatpush2.msra.mxu0 0.0
    %149 = vmatprep.subr.mxu0 0.0
    %150 = vmatpush2.msra.mxu0 0.0
    %151 = vmatprep.subr.mxu0 0.0
    %152 = vmatpush2.msra.mxu0 0.0
    %153 = vmatprep.subr.mxu0 0.0
    %154 = vmatpush2.msra.mxu0 0.0
    %155 = vmatprep.subr.mxu0 0.0
    %156 = vmatpush2.msra.mxu0 0.0
    %157 = vmatprep.subr.mxu0 0.0
    %158 = vmatpush2.msra.mxu0 0.0
    %159 = vmatprep.subr.mxu0 0.0
    %160 = vmatpush2.msra.mxu0 0.0
    %161 = vmatprep.subr.mxu0 0.0
    %162 = vmatpush2.msra.mxu0 0.0
    %163 = vmatprep.subr.mxu0 0.0
    %164 = vmatpush2.msra.mxu0 0.0
    %165 = vmatprep.mubr.f32.mxu0 0.0
    %166 = vmatmul.mubr.f32.gmra.mxu0 %v96
    %v167 = vpop.f32.mrf.mxu0
    %v168 = vadd.f32 %v77, %v167
    %v169 = vpop.f32.mrf.mxu0
    %v170 = vadd.f32 %v81, %v169
    %171 = vmatprep.mubr.f32.mxu0 0.0
    %172 = vmatmul.mubr.f32.gmra.mxu0 %v99
    %v173 = vpop.f32.mrf.mxu0
    %v174 = vadd.f32 %v77, %v173
    %v175 = vpop.f32.mrf.mxu0
    %v176 = vadd.f32 %v81, %v175
    %177 = vdwg.mxu0
    %178 = vmatprep.subr.mxu0 0.0
    %179 = vmatpush1.msra.mxu0 0.0
    %180 = vmatprep.subr.mxu0 0.0
    %181 = vmatpush1.msra.mxu0 0.0
    %182 = vmatprep.subr.mxu0 0.0
    %183 = vmatpush1.msra.mxu0 0.0
    %184 = vmatprep.subr.mxu0 0.0
    %185 = vmatpush1.msra.mxu0 0.0
    %186 = vmatprep.subr.mxu0 0.0
    %187 = vmatpush1.msra.mxu0 0.0
    %188 = vmatprep.subr.mxu0 0.0
    %189 = vmatpush1.msra.mxu0 0.0
    %190 = vmatprep.subr.mxu0 0.0
    %191 = vmatpush1.msra.mxu0 0.0
    %192 = vmatprep.subr.mxu0 0.0
    %193 = vmatpush1.msra.mxu0 0.0
    %194 = vmatprep.subr.mxu0 0.0
    %195 = vmatpush1.msra.mxu0 0.0
    %196 = vmatprep.subr.mxu0 0.0
    %197 = vmatpush1.msra.mxu0 0.0
    %198 = vmatprep.subr.mxu0 0.0
    %199 = vmatpush1.msra.mxu0 0.0
    %200 = vmatprep.subr.mxu0 0.0
    %201 = vmatpush1.msra.mxu0 0.0
    %202 = vmatprep.subr.mxu0 %v71
    %203 = vmatpush1.msra.mxu0 %v70
    %204 = vmatprep.subr.mxu0 %v67
    %205 = vmatpush1.msra.mxu0 %v66
    %206 = vmatprep.subr.mxu0 %v63
    %207 = vmatpush1.msra.mxu0 %v62
    %208 = vmatprep.subr.mxu0 %v59
    %209 = vmatpush1.msra.mxu0 %v58
    %210 = vmatprep.subr.mxu0 0.0
    %211 = vmatpush2.msra.mxu0 0.0
    %212 = vmatprep.subr.mxu0 0.0
    %213 = vmatpush2.msra.mxu0 0.0
    %214 = vmatprep.subr.mxu0 0.0
    %215 = vmatpush2.msra.mxu0 0.0
    %216 = vmatprep.subr.mxu0 0.0
    %217 = vmatpush2.msra.mxu0 0.0
    %218 = vmatprep.subr.mxu0 0.0
    %219 = vmatpush2.msra.mxu0 0.0
    %220 = vmatprep.subr.mxu0 0.0
    %221 = vmatpush2.msra.mxu0 0.0
    %222 = vmatprep.subr.mxu0 0.0
    %223 = vmatpush2.msra.mxu0 0.0
    %224 = vmatprep.subr.mxu0 0.0
    %225 = vmatpush2.msra.mxu0 0.0
    %226 = vmatprep.subr.mxu0 0.0
    %227 = vmatpush2.msra.mxu0 0.0
    %228 = vmatprep.subr.mxu0 0.0
    %229 = vmatpush2.msra.mxu0 0.0
    %230 = vmatprep.subr.mxu0 0.0
    %231 = vmatpush2.msra.mxu0 0.0
    %232 = vmatprep.subr.mxu0 0.0
    %233 = vmatpush2.msra.mxu0 0.0
    %234 = vmatprep.subr.mxu0 0.0
    %235 = vmatpush2.msra.mxu0 0.0
    %236 = vmatprep.subr.mxu0 0.0
    %237 = vmatpush2.msra.mxu0 0.0
    %238 = vmatprep.subr.mxu0 0.0
    %239 = vmatpush2.msra.mxu0 0.0
    %240 = vmatprep.subr.mxu0 0.0
    %241 = vmatpush2.msra.mxu0 0.0
    %242 = vmatprep.mubr.f32.mxu0 0.0
    %243 = vmatmul.mubr.f32.gmra.mxu0 %v96
    %v244 = vpop.f32.mrf.mxu0
    %v245 = vadd.f32 %v85, %v244
    %v246 = vpop.f32.mrf.mxu0
    %v247 = vadd.f32 %v89, %v246
    %248 = vmatprep.mubr.f32.mxu0 0.0
    %249 = vmatmul.mubr.f32.gmra.mxu0 %v99
    %v250 = vpop.f32.mrf.mxu0
    %v251 = vadd.f32 %v85, %v250
    %v252 = vpop.f32.mrf.mxu0
    %v253 = vadd.f32 %v89, %v252
    %254 = vdwg.mxu0
    %v255 = vmax.f32 %v168, %v170
    %v256 = vmax.f32 %v174, %v176
    %v257 = vmax.f32 %v255, %v245
    %v258 = vmax.f32 %v256, %v251
    %v259 = vmax.f32 %v257, %v247
    %v260 = vmax.f32 %v258, %v253
    %vm261 = vcmask 130048
    %262 = vst.msk [vmem:[#allocation8] sm:$0xff] %vm261, %v259
    %263 = vst.msk [vmem:[#allocation8 + $0x8] sm:$0xff] %vm261, %v260
    // Predicated region
    $region26: #{tpu_custom_call.1} parent=1 // pred_check
      _
    $region27: #{tpu_custom_call.1} parent=1 // pred_check_branch
      %265 = sbr.rel (0) target = $region29
    $region28: #{tpu_custom_call.1} parent=1 // pred_region
      %s267 = ssub.s32 256, 256
      %268 = vsyncadd [#allocation4], %s267
      %s269 = sshll.u32 [#allocation8], 4
      %s270 = int_to_ptr.vmem [resolvable:$true] %s269
      %275 = dma.vmem_to_hbm [thread:$0]  %s270, 256, %s3, [#allocation4], 128, 128, 8
    $region29: #{tpu_custom_call.1} parent=1 // pred_fallthru
      _
    // Predicated region
    $region30: #{tpu_custom_call.1} parent=1 // pred_check
      _
    $region31: #{tpu_custom_call.1} parent=1 // pred_check_branch
      %277 = sbr.rel (0) target = $region33
    $region32: #{tpu_custom_call.1} parent=1 // pred_region
      %278 = dma.done [#allocation4], 256
    $region33: #{tpu_custom_call.1} parent=1 // pred_fallthru
      _
    %279 = vsyncpa [#allocation3], 1
    %280 = vsyncpa [#allocation6], 1
    %281 = vsyncpa [#allocation4], 1

// kernel: tpu_custom_call.1
$region0: #{tpu_custom_call.1}
  #allocation0 [shape = 'u32[]', space=smem, size = 0x4, offset = 0x4, fixed_abs, tag = 'smem constant byte address 0x4 - core index']
  #allocation1 [shape = 'u32[144,128]{1,0:T(1,128)}', space=vmem, size = 0x12000, scoped, tag = 'internal scratch']
  %s0 = inlined_call_operand.hbm [shape: f32[16,32], index: 0, kind: input, shape index: {}]
  %s1 = inlined_call_operand.hbm [shape: f32[32,512], index: 1, kind: input, shape index: {}]
  %s2 = inlined_call_operand.hbm [shape: f32[1,512], index: 2, kind: input, shape index: {}]
  %s3 = inlined_call_operand.hbm [shape: f32[16,16], index: 3, kind: output, shape index: {}]
  %s4 = sld [smem:[#allocation0]]
  $region34: #{tpu_custom_call.1} parent=0
    _
  %s6 = ssub.s32 1, %s4
  %s7 = scalar_select 0, %s6, %s4
  $region1: #{tpu_custom_call.1} parent=0
    #allocation2 [shape = 'u8[8192]{0}', space=vmem, size = 0x2000, scoped, tag = 'input window, operand 0, single buffered']
    #allocation3 [shape = 's32[1]{0}', space=sflag, size = 0x4, scoped, tag = 'scoped memory for tpu_custom_call.1']
    #allocation4 [shape = 's32[1]{0}', space=sflag, size = 0x4, scoped, tag = 'scoped memory for tpu_custom_call.1']
    #allocation5 [shape = 'u8[65536]{0}', space=vmem, size = 0x10000, scoped, tag = 'input window, operand 1, single buffered']
    #allocation6 [shape = 's32[1]{0}', space=sflag, size = 0x4, scoped, tag = 'scoped memory for tpu_custom_call.1']
    #allocation7 [shape = 'u8[2048]{0}', space=vmem, size = 0x800, scoped, tag = 'input window, operand 2, single buffered']
    #allocation8 [shape = 'u8[8192]{0}', space=vmem, size = 0x2000, scoped, tag = 'output window, operand 0, single buffered']
    %8 = vsyncpa [#allocation3], 0
    %9 = vsyncpa [#allocation6], 0
    %10 = vsyncpa [#allocation4], 0
    // Predicated region
    $region2: #{tpu_custom_call.1} parent=1 // pred_check
      _
    $region3: #{tpu_custom_call.1} parent=1 // pred_check_branch
      %12 = sbr.rel (0) target = $region5
    $region4: #{tpu_custom_call.1} parent=1 // pred_region
      %s14 = ssub.s32 256, 256
      %15 = vsyncadd [#allocation3], %s14
      %s16 = sshll.u32 [#allocation2], 4
      %s17 = int_to_ptr.vmem [resolvable:$true] %s16
      %22 = dma.hbm_to_vmem [thread:$0]  %s0, 256, %s17, [#allocation3], 128, 128, 8
    $region5: #{tpu_custom_call.1} parent=1 // pred_fallthru
      _
    // Predicated region
    $region6: #{tpu_custom_call.1} parent=1 // pred_check
      _
    $region7: #{tpu_custom_call.1} parent=1 // pred_check_branch
      %24 = sbr.rel (0) target = $region9
    $region8: #{tpu_custom_call.1} parent=1 // pred_region
      %s26 = ssub.s32 2048, 2048
      %27 = vsyncadd [#allocation6], %s26
      %s28 = sshll.u32 [#allocation5], 4
      %s29 = int_to_ptr.vmem [resolvable:$true] %s28
      %34 = dma.hbm_to_vmem [thread:$0]  %s1, 2048, %s29, [#allocation6], 512, 512, 32
    $region9: #{tpu_custom_call.1} parent=1 // pred_fallthru
      _
    // Predicated region
    $region10: #{tpu_custom_call.1} parent=1 // pred_check
      _
    $region11: #{tpu_custom_call.1} parent=1 // pred_check_branch
      %36 = sbr.rel (0) target = $region13
    $region12: #{tpu_custom_call.1} parent=1 // pred_region
      %s38 = ssub.s32 64, 64
      %39 = vsyncadd [#allocation6], %s38
      %s41 = sshll.u32 [#allocation7], 4
      %s42 = int_to_ptr.vmem [resolvable:$true] %s41
      %44 = dma.hbm_to_vmem [thread:$0]  %s2, 64, %s42, [#allocation6]
    $region13: #{tpu_custom_call.1} parent=1 // pred_fallthru
      _
    // Predicated region
    $region14: #{tpu_custom_call.1} parent=1 // pred_check
      _
    $region15: #{tpu_custom_call.1} parent=1 // pred_check_branch
      %46 = sbr.rel (0) target = $region17
    $region16: #{tpu_custom_call.1} parent=1 // pred_region
      %47 = dma.done [#allocation3], 256
    $region17: #{tpu_custom_call.1} parent=1 // pred_fallthru
      _
    // Predicated region
    $region18: #{tpu_custom_call.1} parent=1 // pred_check
      _
    $region19: #{tpu_custom_call.1} parent=1 // pred_check_branch
      %49 = sbr.rel (0) target = $region21
    $region20: #{tpu_custom_call.1} parent=1 // pred_region
      %50 = dma.done [#allocation6], 2048
    $region21: #{tpu_custom_call.1} parent=1 // pred_fallthru
      _
    // Predicated region
    $region22: #{tpu_custom_call.1} parent=1 // pred_check
      _
    $region23: #{tpu_custom_call.1} parent=1 // pred_check_branch
      %52 = sbr.rel (0) target = $region25
    $region24: #{tpu_custom_call.1} parent=1 // pred_region
      %53 = dma.done [#allocation6], 64
    $region25: #{tpu_custom_call.1} parent=1 // pred_fallthru
      _
    %v54 = vld [vmem:[#allocation2] sm:$0xff]
    %v55 = vld [vmem:[#allocation2 + $0x8] sm:$0xff]
    %v56 = vld [vmem:[#allocation5] sm:$0xff]
    %v57 = vld [vmem:[#allocation5 + $0x8] sm:$0xff]
    %v58 = vld [vmem:[#allocation5 + $0x10] sm:$0xff]
    %v59 = vld [vmem:[#allocation5 + $0x18] sm:$0xff]
    %v60 = vld [vmem:[#allocation5 + $0x20] sm:$0xff]
    %v61 = vld [vmem:[#allocation5 + $0x28] sm:$0xff]
    %v62 = vld [vmem:[#allocation5 + $0x30] sm:$0xff]
    %v63 = vld [vmem:[#allocation5 + $0x38] sm:$0xff]
    %v64 = vld [vmem:[#allocation5 + $0x40] sm:$0xff]
    %v65 = vld [vmem:[#allocation5 + $0x48] sm:$0xff]
    %v66 = vld [vmem:[#allocation5 + $0x50] sm:$0xff]
    %v67 = vld [vmem:[#allocation5 + $0x58] sm:$0xff]
    %v68 = vld [vmem:[#allocation5 + $0x60] sm:$0xff]
    %v69 = vld [vmem:[#allocation5 + $0x68] sm:$0xff]
    %v70 = vld [vmem:[#allocation5 + $0x70] sm:$0xff]
    %v71 = vld [vmem:[#allocation5 + $0x78] sm:$0xff]
    %v72 = vld [vmem:[#allocation7] sm:$0xf]
    %v74 = vlaneseq
    %v75 = vshrl.u32 %v74, 7
    %v76 = vsub.s32 0, %v75
    %v77 = vrot.slane %v72, %v76
    %v78 = vlaneseq
    %v79 = vshrl.u32 %v78, 7
    %v80 = vsub.s32 1, %v79
    %v81 = vrot.slane %v72, %v80
    %v82 = vlaneseq
    %v83 = vshrl.u32 %v82, 7
    %v84 = vsub.s32 2, %v83
    %v85 = vrot.slane %v72, %v84
    %v86 = vlaneseq
    %v87 = vshrl.u32 %v86, 7
    %v88 = vsub.s32 3, %v87
    %v89 = vrot.slane %v72, %v88
    %vm94 = vcmask 261120
    %v96 = vsel %vm94, %v54, 0
    %v99 = vsel %vm94, %v55, 0
    %101 = vmatprep.subr.mxu0 0.0
    %102 = vmatpush1.msra.mxu0 0.0
    %103 = vmatprep.subr.mxu0 0.0
    %104 = vmatpush1.msra.mxu0 0.0
    %105 = vmatprep.subr.mxu0 0.0
    %106 = vmatpush1.msra.mxu0 0.0
    %107 = vmatprep.subr.mxu0 0.0
    %108 = vmatpush1.msra.mxu0 0.0
    %109 = vmatprep.subr.mxu0 0.0
    %110 = vmatpush1.msra.mxu0 0.0
    %111 = vmatprep.subr.mxu0 0.0
    %112 = vmatpush1.msra.mxu0 0.0
    %113 = vmatprep.subr.mxu0 0.0
    %114 = vmatpush1.msra.mxu0 0.0
    %115 = vmatprep.subr.mxu0 0.0
    %116 = vmatpush1.msra.mxu0 0.0
    %117 = vmatprep.subr.mxu0 0.0
    %118 = vmatpush1.msra.mxu0 0.0
    %119 = vmatprep.subr.mxu0 0.0
    %120 = vmatpush1.msra.mxu0 0.0
    %121 = vmatprep.subr.mxu0 0.0
    %122 = vmatpush1.msra.mxu0 0.0
    %123 = vmatprep.subr.mxu0 0.0
    %124 = vmatpush1.msra.mxu0 0.0
    %125 = vmatprep.subr.mxu0 %v69
    %126 = vmatpush1.msra.mxu0 %v68
    %127 = vmatprep.subr.mxu0 %v65
    %128 = vmatpush1.msra.mxu0 %v64
    %129 = vmatprep.subr.mxu0 %v61
    %130 = vmatpush1.msra.mxu0 %v60
    %131 = vmatprep.subr.mxu0 %v57
    %132 = vmatpush1.msra.mxu0 %v56
    %133 = vmatprep.subr.mxu0 0.0
    %134 = vmatpush2.msra.mxu0 0.0
    %135 = vmatprep.subr.mxu0 0.0
    %136 = vmatpush2.msra.mxu0 0.0
    %137 = vmatprep.subr.mxu0 0.0
    %138 = vmatpush2.msra.mxu0 0.0
    %139 = vmatprep.subr.mxu0 0.0
    %140 = vmatpush2.msra.mxu0 0.0
    %141 = vmatprep.subr.mxu0 0.0
    %142 = vmatpush2.msra.mxu0 0.0
    %143 = vmatprep.subr.mxu0 0.0
    %144 = vmatpush2.msra.mxu0 0.0
    %145 = vmatprep.subr.mxu0 0.0
    %146 = vmatpush2.msra.mxu0 0.0
    %147 = vmatprep.subr.mxu0 0.0
    %148 = vmatpush2.msra.mxu0 0.0
    %149 = vmatprep.subr.mxu0 0.0
    %150 = vmatpush2.msra.mxu0 0.0
    %151 = vmatprep.subr.mxu0 0.0
    %152 = vmatpush2.msra.mxu0 0.0
    %153 = vmatprep.subr.mxu0 0.0
    %154 = vmatpush2.msra.mxu0 0.0
    %155 = vmatprep.subr.mxu0 0.0
    %156 = vmatpush2.msra.mxu0 0.0
    %157 = vmatprep.subr.mxu0 0.0
    %158 = vmatpush2.msra.mxu0 0.0
    %159 = vmatprep.subr.mxu0 0.0
    %160 = vmatpush2.msra.mxu0 0.0
    %161 = vmatprep.subr.mxu0 0.0
    %162 = vmatpush2.msra.mxu0 0.0
    %163 = vmatprep.subr.mxu0 0.0
    %164 = vmatpush2.msra.mxu0 0.0
    %165 = vmatprep.mubr.f32.mxu0 0.0
    %166 = vmatmul.mubr.f32.gmra.mxu0 %v96
    %v167 = vpop.f32.mrf.mxu0
    %v168 = vadd.f32 %v77, %v167
    %v169 = vpop.f32.mrf.mxu0
    %v170 = vadd.f32 %v81, %v169
    %171 = vmatprep.mubr.f32.mxu0 0.0
    %172 = vmatmul.mubr.f32.gmra.mxu0 %v99
    %v173 = vpop.f32.mrf.mxu0
    %v174 = vadd.f32 %v77, %v173
    %v175 = vpop.f32.mrf.mxu0
    %v176 = vadd.f32 %v81, %v175
    %177 = vdwg.mxu0
    %178 = vmatprep.subr.mxu0 0.0
    %179 = vmatpush1.msra.mxu0 0.0
    %180 = vmatprep.subr.mxu0 0.0
    %181 = vmatpush1.msra.mxu0 0.0
    %182 = vmatprep.subr.mxu0 0.0
    %183 = vmatpush1.msra.mxu0 0.0
    %184 = vmatprep.subr.mxu0 0.0
    %185 = vmatpush1.msra.mxu0 0.0
    %186 = vmatprep.subr.mxu0 0.0
    %187 = vmatpush1.msra.mxu0 0.0
    %188 = vmatprep.subr.mxu0 0.0
    %189 = vmatpush1.msra.mxu0 0.0
    %190 = vmatprep.subr.mxu0 0.0
    %191 = vmatpush1.msra.mxu0 0.0
    %192 = vmatprep.subr.mxu0 0.0
    %193 = vmatpush1.msra.mxu0 0.0
    %194 = vmatprep.subr.mxu0 0.0
    %195 = vmatpush1.msra.mxu0 0.0
    %196 = vmatprep.subr.mxu0 0.0
    %197 = vmatpush1.msra.mxu0 0.0
    %198 = vmatprep.subr.mxu0 0.0
    %199 = vmatpush1.msra.mxu0 0.0
    %200 = vmatprep.subr.mxu0 0.0
    %201 = vmatpush1.msra.mxu0 0.0
    %202 = vmatprep.subr.mxu0 %v71
    %203 = vmatpush1.msra.mxu0 %v70
    %204 = vmatprep.subr.mxu0 %v67
    %205 = vmatpush1.msra.mxu0 %v66
    %206 = vmatprep.subr.mxu0 %v63
    %207 = vmatpush1.msra.mxu0 %v62
    %208 = vmatprep.subr.mxu0 %v59
    %209 = vmatpush1.msra.mxu0 %v58
    %210 = vmatprep.subr.mxu0 0.0
    %211 = vmatpush2.msra.mxu0 0.0
    %212 = vmatprep.subr.mxu0 0.0
    %213 = vmatpush2.msra.mxu0 0.0
    %214 = vmatprep.subr.mxu0 0.0
    %215 = vmatpush2.msra.mxu0 0.0
    %216 = vmatprep.subr.mxu0 0.0
    %217 = vmatpush2.msra.mxu0 0.0
    %218 = vmatprep.subr.mxu0 0.0
    %219 = vmatpush2.msra.mxu0 0.0
    %220 = vmatprep.subr.mxu0 0.0
    %221 = vmatpush2.msra.mxu0 0.0
    %222 = vmatprep.subr.mxu0 0.0
    %223 = vmatpush2.msra.mxu0 0.0
    %224 = vmatprep.subr.mxu0 0.0
    %225 = vmatpush2.msra.mxu0 0.0
    %226 = vmatprep.subr.mxu0 0.0
    %227 = vmatpush2.msra.mxu0 0.0
    %228 = vmatprep.subr.mxu0 0.0
    %229 = vmatpush2.msra.mxu0 0.0
    %230 = vmatprep.subr.mxu0 0.0
    %231 = vmatpush2.msra.mxu0 0.0
    %232 = vmatprep.subr.mxu0 0.0
    %233 = vmatpush2.msra.mxu0 0.0
    %234 = vmatprep.subr.mxu0 0.0
    %235 = vmatpush2.msra.mxu0 0.0
    %236 = vmatprep.subr.mxu0 0.0
    %237 = vmatpush2.msra.mxu0 0.0
    %238 = vmatprep.subr.mxu0 0.0
    %239 = vmatpush2.msra.mxu0 0.0
    %240 = vmatprep.subr.mxu0 0.0
    %241 = vmatpush2.msra.mxu0 0.0
    %242 = vmatprep.mubr.f32.mxu0 0.0
    %243 = vmatmul.mubr.f32.gmra.mxu0 %v96
    %v244 = vpop.f32.mrf.mxu0
    %v245 = vadd.f32 %v85, %v244
    %v246 = vpop.f32.mrf.mxu0
    %v247 = vadd.f32 %v89, %v246
    %248 = vmatprep.mubr.f32.mxu0 0.0
    %249 = vmatmul.mubr.f32.gmra.mxu0 %v99
    %v250 = vpop.f32.mrf.mxu0
    %v251 = vadd.f32 %v85, %v250
    %v252 = vpop.f32.mrf.mxu0
    %v253 = vadd.f32 %v89, %v252
    %254 = vdwg.mxu0
    %v255 = vmax.f32 %v168, %v170
    %v256 = vmax.f32 %v174, %v176
    %v257 = vmax.f32 %v255, %v245
    %v258 = vmax.f32 %v256, %v251
    %v259 = vmax.f32 %v257, %v247
    %v260 = vmax.f32 %v258, %v253
    %vm261 = vcmask 130048
    %262 = vst.msk [vmem:[#allocation8] sm:$0xff] %vm261, %v259
    %263 = vst.msk [vmem:[#allocation8 + $0x8] sm:$0xff] %vm261, %v260
    // Predicated region
    $region26: #{tpu_custom_call.1} parent=1 // pred_check
      _
    $region27: #{tpu_custom_call.1} parent=1 // pred_check_branch
      %265 = sbr.rel (0) target = $region29
    $region28: #{tpu_custom_call.1} parent=1 // pred_region
      %s267 = ssub.s32 256, 256
      %268 = vsyncadd [#allocation4], %s267
      %s269 = sshll.u32 [#allocation8], 4
      %s270 = int_to_ptr.vmem [resolvable:$true] %s269
      %275 = dma.vmem_to_hbm [thread:$0]  %s270, 256, %s3, [#allocation4], 128, 128, 8
    $region29: #{tpu_custom_call.1} parent=1 // pred_fallthru
      _
    // Predicated region
    $region30: #{tpu_custom_call.1} parent=1 // pred_check
      _
    $region31: #{tpu_custom_call.1} parent=1 // pred_check_branch
      %277 = sbr.rel (0) target = $region33
    $region32: #{tpu_custom_call.1} parent=1 // pred_region
      %278 = dma.done [#allocation4], 256
    $region33: #{tpu_custom_call.1} parent=1 // pred_fallthru
      _
    %279 = vsyncpa [#allocation3], 1
    %280 = vsyncpa [#allocation6], 1
    %281 = vsyncpa [#allocation4], 1

</llo_original>
